<compile_context>
chip_gen: v7x
topology: tpu7x:2x2x1
jax: 0.10.0
libtpu: 0.0.40
codegen_flags: <defaults>
</compile_context>

<pallas_src>
import jax
import jax.numpy as jnp
from jax import lax
from jax.experimental import pallas as pl
from jax.experimental.pallas import tpu as pltpu


def _round_up(x, m):
    return ((x + m - 1) // m) * m


def _pad2d(a, rows, cols):
    r, c = a.shape
    return jnp.pad(a, ((0, rows - r), (0, cols - c)))


# -----------------------------------------------------------------------------
# Single-step cell kernel (== SimpleRNNCell.forward(input, hidden)).
# W arrives already upper-triangular-masked AND transposed ([in, out]) from
# the wrapper, so the contraction is a canonical [M,K]x[K,N] matmul.
# -----------------------------------------------------------------------------
def _rnn_cell_kernel(x_ref, h_ref, wt_ref, b_ref, o_ref):
    hm = jnp.dot(h_ref[...].astype(jnp.float32), wt_ref[...],
                 preferred_element_type=jnp.float32)
    out = jnp.maximum(hm + b_ref[...] + x_ref[...].astype(jnp.float32), 0.0)
    o_ref[...] = out.astype(o_ref.dtype)


@jax.jit
def simple_rnn_cell(x, h, W, b):
    """One RNN-cell step.  x, h: (B, H); W: (H, H) [out,in]; b: (H,) -> (B, H)."""
    B, H = x.shape
    Bp = _round_up(max(B, 8), 8)        # sublane-dense
    Hp = _round_up(max(H, 128), 128)    # lane-dense: full vst / full MXU tile
    out_dtype = x.dtype

    # Mask + transpose hoisted out of the kernel (one-time XLA work).
    W_t = jnp.triu(W).T                 # (in_features, out_features)
    x_p = _pad2d(x, Bp, Hp)
    h_p = _pad2d(h, Bp, Hp).astype(out_dtype)
    W_p = _pad2d(W_t, Hp, Hp)
    b_p = jnp.pad(b, (0, Hp - H)).reshape(1, Hp)

    full = lambda shape: pl.BlockSpec(shape, lambda: tuple(0 for _ in shape))
    out_p = pl.pallas_call(
        _rnn_cell_kernel,
        out_shape=jax.ShapeDtypeStruct((Bp, Hp), out_dtype),
        grid=(),
        in_specs=[full((Bp, Hp)), full((Bp, Hp)), full((Hp, Hp)), full((1, Hp))],
        out_specs=full((Bp, Hp)),
        # Reuse the hidden-state buffer for the new hidden state.  NOTE: for a
        # caller-driven scan, hoist triu/transpose/pad out of the scan body and
        # keep h in the padded (Bp,Hp) layout so this aliasing stays zero-copy.
        input_output_aliases={1: 0},
    )(x_p, h_p, W_p, b_p)
    return out_p[:B, :H]


# -----------------------------------------------------------------------------
# Fused multi-timestep kernel: the whole recurrence in one pallas_call.
# Each grid step consumes a (T_BLK, Bp, Hp) slab of x and produces the matching
# slab of outputs; the hidden state is carried in a VMEM f32 scratch across
# grid steps.  The time-block axis is "arbitrary" (sequential dependence).
# -----------------------------------------------------------------------------
def _rnn_seq_kernel(x_ref, h0_ref, wt_ref, b_ref, o_ref, h_acc):
    tb = pl.program_id(0)

    @pl.when(tb == 0)
    def _():
        h_acc[...] = h0_ref[...].astype(jnp.float32)

    w = wt_ref[...]          # resident [K, N] weight (pre-masked, pre-transposed)
    bias = b_ref[...]        # resident (1, Hp) bias
    t_blk = x_ref.shape[0]   # static

    def step(i, carry):
        hm = jnp.dot(h_acc[...], w, preferred_element_type=jnp.float32)
        h_new = jnp.maximum(hm + bias + x_ref[i].astype(jnp.float32), 0.0)
        h_acc[...] = h_new
        o_ref[i] = h_new.astype(o_ref.dtype)
        return carry

    # Unrolled: T_BLK is static, gives the LLO scheduler full visibility.
    lax.fori_loop(0, t_blk, step, 0, unroll=True)
    # NOTE: padded batch rows of h_acc accumulate relu(b) != 0; harmless since
    # batch rows are independent and sliced away — do not reduce over batch.


@jax.jit
def simple_rnn_sequence(xs, h0, W, b):
    """Apply the cell over a sequence.  xs: (T, B, H); h0: (B, H) -> (T, B, H)."""
    T, B, H = xs.shape
    Bp = _round_up(max(B, 8), 8)
    Hp = _round_up(max(H, 128), 128)
    out_dtype = xs.dtype

    # Timesteps per grid iteration (amortizes ~0.35us per-grid-step overhead).
    T_BLK = min(T, 32)
    Tp = _round_up(T, T_BLK)
    n_blocks = Tp // T_BLK

    W_t = jnp.triu(W).T                 # masked + transposed once per sequence
    xs_p = jnp.pad(xs, ((0, Tp - T), (0, Bp - B), (0, Hp - H)))
    h0_p = _pad2d(h0, Bp, Hp)
    W_p = _pad2d(W_t, Hp, Hp)
    b_p = jnp.pad(b, (0, Hp - H)).reshape(1, Hp)

    out_p = pl.pallas_call(
        _rnn_seq_kernel,
        out_shape=jax.ShapeDtypeStruct((Tp, Bp, Hp), out_dtype),
        grid=(n_blocks,),
        in_specs=[
            pl.BlockSpec((T_BLK, Bp, Hp), lambda tb: (tb, 0, 0)),  # x slab streamed
            pl.BlockSpec((Bp, Hp), lambda tb: (0, 0)),             # h0 (resident)
            pl.BlockSpec((Hp, Hp), lambda tb: (0, 0)),             # W_t (resident)
            pl.BlockSpec((1, Hp), lambda tb: (0, 0)),              # bias (resident)
        ],
        out_specs=pl.BlockSpec((T_BLK, Bp, Hp), lambda tb: (tb, 0, 0)),
        scratch_shapes=[pltpu.VMEM((Bp, Hp), jnp.float32)],        # carried hidden
        compiler_params=pltpu.CompilerParams(
            dimension_semantics=("arbitrary",)),                   # sequential in t
    )(xs_p, h0_p, W_p, b_p)
    return out_p[:T, :B, :H]


# -----------------------------------------------------------------------------
# Pure-JAX references.
# -----------------------------------------------------------------------------
def simple_rnn_cell_ref(x, h, W, b):
    return jnp.maximum(h @ jnp.triu(W).T + b + x, 0.0)


def simple_rnn_sequence_ref(xs, h0, W, b):
    W_ut = jnp.triu(W)

    def step(h, x):
        h_new = jnp.maximum(h @ W_ut.T + b + x, 0.0)
        return h_new, h_new

    _, hs = lax.scan(step, h0, xs)
    return hs


if __name__ == "__main__":
    B, H, T = 4, 32, 8   # batch, hidden_size, timesteps (input_size unused)

    key = jax.random.PRNGKey(0)
    kx, kh, kw, kb, ks = jax.random.split(key, 5)

    # Deterministic "nn.Linear"-style init: U(-1/sqrt(H), 1/sqrt(H))
    bound = 1.0 / (H ** 0.5)
    W = jax.random.uniform(kw, (H, H), jnp.float32, minval=-bound, maxval=bound)
    bias = jax.random.uniform(kb, (H,), jnp.float32, minval=-bound, maxval=bound)

    x = jax.random.normal(kx, (B, H), jnp.float32)       # `input` arg
    h = jax.random.normal(kh, (B, H), jnp.float32)       # `hidden` arg
    xs = jax.random.normal(ks, (T, B, H), jnp.float32)   # a short sequence

    # Single step (exact SimpleRNNCell.forward semantics).
    out = jax.block_until_ready(simple_rnn_cell(x, h, W, bias))
    ref = simple_rnn_cell_ref(x, h, W, bias)
    assert out.shape == (B, H)
    assert jnp.allclose(out, ref, atol=1e-5, rtol=1e-5), "cell mismatch vs reference"

    # Fused, time-blocked recurrence: T cell applications in one pallas_call.
    hs = jax.block_until_ready(simple_rnn_sequence(xs, h, W, bias))
    hs_ref = simple_rnn_sequence_ref(xs, h, W, bias)
    assert hs.shape == (T, B, H)
    assert jnp.allclose(hs, hs_ref, atol=1e-4, rtol=1e-4), "sequence mismatch vs reference"

    print("KERNEL_OK")
</pallas_src>

<mosaic_0001>
module attributes {stable_mosaic.version = 11 : i64} {
  func.func @_rnn_cell_kernel(%arg0: memref<8x128xf32, #tpu.memory_space<vmem>>, %arg1: memref<8x128xf32, #tpu.memory_space<vmem>>, %arg2: memref<128x128xf32, #tpu.memory_space<vmem>>, %arg3: memref<1x128xf32, #tpu.memory_space<vmem>>, %arg4: memref<8x128xf32, #tpu.memory_space<vmem>>) attributes {dimension_semantics = [], scalar_prefetch = 0 : i64, scratch_operands = 0 : i64, tpu.core_type = #tpu.core_type<tc>} {
    %c0 = arith.constant 0 : index
    %c0_0 = arith.constant 0 : index
    %0 = vector.load %arg1[%c0, %c0_0] : memref<8x128xf32, #tpu.memory_space<vmem>>, vector<8x128xf32>
    %c0_1 = arith.constant 0 : index
    %c0_2 = arith.constant 0 : index
    %1 = vector.load %arg2[%c0_1, %c0_2] : memref<128x128xf32, #tpu.memory_space<vmem>>, vector<128x128xf32>
    %cst = arith.constant dense<0.000000e+00> : vector<8x128xf32>
    %2 = tpu.matmul %0, %1, %cst {dimension_numbers = #tpu.dot_dimension_numbers<[1], [0], [0], [1], [0, 0, 1, 1], [], []>} : vector<8x128xf32>, vector<128x128xf32>, vector<8x128xf32> -> vector<8x128xf32>
    %c0_3 = arith.constant 0 : index
    %c0_4 = arith.constant 0 : index
    %3 = vector.load %arg3[%c0_3, %c0_4] : memref<1x128xf32, #tpu.memory_space<vmem>>, vector<1x128xf32>
    %4 = vector.broadcast %3 : vector<1x128xf32> to vector<8x128xf32>
    %5 = arith.addf %2, %4 : vector<8x128xf32>
    %c0_5 = arith.constant 0 : index
    %c0_6 = arith.constant 0 : index
    %6 = vector.load %arg0[%c0_5, %c0_6] : memref<8x128xf32, #tpu.memory_space<vmem>>, vector<8x128xf32>
    %7 = arith.addf %5, %6 : vector<8x128xf32>
    %cst_7 = arith.constant 0.000000e+00 : f32
    %8 = vector.broadcast %cst_7 : f32 to vector<8x128xf32>
    %9 = arith.maximumf %7, %8 : vector<8x128xf32>
    %c0_8 = arith.constant 0 : index
    %c0_9 = arith.constant 0 : index
    %10 = vector.load %arg4[%c0_8, %c0_9] : memref<8x128xf32, #tpu.memory_space<vmem>>, vector<8x128xf32>
    tpu.vector_store %arg4[%c0_8, %c0_9], %9 {strides = array<i32>} : memref<8x128xf32, #tpu.memory_space<vmem>>, vector<8x128xf32>,
    return
  }
}

</mosaic_0001>

<llo_original>
// kernel: simple_rnn_cell.1
$region0: #{simple_rnn_cell.1}
  #allocation0 [shape = 'u32[]', space=smem, size = 0x4, offset = 0x4, fixed_abs, tag = 'smem constant byte address 0x4 - core index']
  #allocation1 [shape = 'u32[144,128]{1,0:T(1,128)}', space=vmem, size = 0x12000, scoped, tag = 'internal scratch']
  %s0 = inlined_call_operand.vmem [shape: f32[8,128], index: 0, kind: input, shape index: {}]
  %s1 = inlined_call_operand.vmem [shape: f32[8,128], index: 1, kind: input, shape index: {}, may-alias: {1,4}]
  %s2 = inlined_call_operand.vmem [shape: f32[128,128], index: 2, kind: input, shape index: {}]
  %s3 = inlined_call_operand.vmem [shape: f32[1,128], index: 3, kind: input, shape index: {}]
  %s4 = inlined_call_operand.vmem [shape: f32[8,128], index: 4, kind: output, shape index: {}, may-alias: {1,4}]
  %s5 = sld [smem:[#allocation0]]
  $region26: #{simple_rnn_cell.1} parent=0
    _
  %s7 = ssub.s32 1, %s5
  %s8 = scalar_select 0, %s7, %s5
  // Predicated region
  $region2: #{simple_rnn_cell.1} parent=0 // pred_check
    _
  $region3: #{simple_rnn_cell.1} parent=0 // pred_check_branch
    %10 = sbr.rel (0) target = $region5
  $region4: #{simple_rnn_cell.1} parent=0 // pred_region
    _
  $region5: #{simple_rnn_cell.1} parent=0 // pred_fallthru
    _
  // Predicated region
  $region6: #{simple_rnn_cell.1} parent=0 // pred_check
    _
  $region7: #{simple_rnn_cell.1} parent=0 // pred_check_branch
    %12 = sbr.rel (0) target = $region9
  $region8: #{simple_rnn_cell.1} parent=0 // pred_region
    _
  $region9: #{simple_rnn_cell.1} parent=0 // pred_fallthru
    _
  // Predicated region
  $region10: #{simple_rnn_cell.1} parent=0 // pred_check
    _
  $region11: #{simple_rnn_cell.1} parent=0 // pred_check_branch
    %14 = sbr.rel (0) target = $region13
  $region12: #{simple_rnn_cell.1} parent=0 // pred_region
    _
  $region13: #{simple_rnn_cell.1} parent=0 // pred_fallthru
    _
  // Predicated region
  $region14: #{simple_rnn_cell.1} parent=0 // pred_check
    _
  $region15: #{simple_rnn_cell.1} parent=0 // pred_check_branch
    %16 = sbr.rel (0) target = $region17
  $region16: #{simple_rnn_cell.1} parent=0 // pred_region
    _
  $region17: #{simple_rnn_cell.1} parent=0 // pred_fallthru
    _
  %v17 = vld [vmem:[%s1] sm:$0xff]
  %v18 = vld [vmem:[%s2] sm:$0xff]
  %v19 = vld [vmem:[%s2 + $0x8] sm:$0xff]
  %v20 = vld [vmem:[%s2 + $0x10] sm:$0xff]
  %v21 = vld [vmem:[%s2 + $0x18] sm:$0xff]
  %v22 = vld [vmem:[%s2 + $0x20] sm:$0xff]
  %v23 = vld [vmem:[%s2 + $0x28] sm:$0xff]
  %v24 = vld [vmem:[%s2 + $0x30] sm:$0xff]
  %v25 = vld [vmem:[%s2 + $0x38] sm:$0xff]
  %v26 = vld [vmem:[%s2 + $0x40] sm:$0xff]
  %v27 = vld [vmem:[%s2 + $0x48] sm:$0xff]
  %v28 = vld [vmem:[%s2 + $0x50] sm:$0xff]
  %v29 = vld [vmem:[%s2 + $0x58] sm:$0xff]
  %v30 = vld [vmem:[%s2 + $0x60] sm:$0xff]
  %v31 = vld [vmem:[%s2 + $0x68] sm:$0xff]
  %v32 = vld [vmem:[%s2 + $0x70] sm:$0xff]
  %v33 = vld [vmem:[%s2 + $0x78] sm:$0xff]
  %v34 = vld [vmem:[%s3] sm:$0x1]
  %v36 = vlaneseq
  %v37 = vshrl.u32 %v36, 7
  %v38 = vsub.s32 0, %v37
  %v39 = vrot.slane %v34, %v38
  %41 = vmatprep.subr.mxu0 0.0
  %42 = vmatpush1.msra.mxu0 %v18
  %43 = vmatprep.subr.mxu0 0.0
  %44 = vmatpush1.msra.mxu0 %v19
  %45 = vmatprep.subr.mxu0 0.0
  %46 = vmatpush1.msra.mxu0 %v20
  %47 = vmatprep.subr.mxu0 0.0
  %48 = vmatpush1.msra.mxu0 %v21
  %49 = vmatprep.subr.mxu0 0.0
  %50 = vmatpush1.msra.mxu0 %v22
  %51 = vmatprep.subr.mxu0 0.0
  %52 = vmatpush1.msra.mxu0 %v23
  %53 = vmatprep.subr.mxu0 0.0
  %54 = vmatpush1.msra.mxu0 %v24
  %55 = vmatprep.subr.mxu0 0.0
  %56 = vmatpush1.msra.mxu0 %v25
  %57 = vmatprep.subr.mxu0 0.0
  %58 = vmatpush1.msra.mxu0 %v26
  %59 = vmatprep.subr.mxu0 0.0
  %60 = vmatpush1.msra.mxu0 %v27
  %61 = vmatprep.subr.mxu0 0.0
  %62 = vmatpush1.msra.mxu0 %v28
  %63 = vmatprep.subr.mxu0 0.0
  %64 = vmatpush1.msra.mxu0 %v29
  %65 = vmatprep.subr.mxu0 0.0
  %66 = vmatpush1.msra.mxu0 %v30
  %67 = vmatprep.subr.mxu0 0.0
  %68 = vmatpush1.msra.mxu0 %v31
  %69 = vmatprep.subr.mxu0 0.0
  %70 = vmatpush1.msra.mxu0 %v32
  %71 = vmatprep.subr.mxu0 0.0
  %72 = vmatpush1.msra.mxu0 %v33
  %73 = vmatprep.subr.mxu0 0.0
  %74 = vmatpush1.msra.mxu0 0.0
  %75 = vmatprep.subr.mxu0 0.0
  %76 = vmatpush1.msra.mxu0 0.0
  %77 = vmatprep.subr.mxu0 0.0
  %78 = vmatpush1.msra.mxu0 0.0
  %79 = vmatprep.subr.mxu0 0.0
  %80 = vmatpush1.msra.mxu0 0.0
  %81 = vmatprep.subr.mxu0 0.0
  %82 = vmatpush1.msra.mxu0 0.0
  %83 = vmatprep.subr.mxu0 0.0
  %84 = vmatpush1.msra.mxu0 0.0
  %85 = vmatprep.subr.mxu0 0.0
  %86 = vmatpush1.msra.mxu0 0.0
  %87 = vmatprep.subr.mxu0 0.0
  %88 = vmatpush1.msra.mxu0 0.0
  %89 = vmatprep.subr.mxu0 0.0
  %90 = vmatpush1.msra.mxu0 0.0
  %91 = vmatprep.subr.mxu0 0.0
  %92 = vmatpush1.msra.mxu0 0.0
  %93 = vmatprep.subr.mxu0 0.0
  %94 = vmatpush1.msra.mxu0 0.0
  %95 = vmatprep.subr.mxu0 0.0
  %96 = vmatpush1.msra.mxu0 0.0
  %97 = vmatprep.subr.mxu0 0.0
  %98 = vmatpush1.msra.mxu0 0.0
  %99 = vmatprep.subr.mxu0 0.0
  %100 = vmatpush1.msra.mxu0 0.0
  %101 = vmatprep.subr.mxu0 0.0
  %102 = vmatpush1.msra.mxu0 0.0
  %103 = vmatprep.subr.mxu0 0.0
  %104 = vmatpush1.msra.mxu0 0.0
  %105 = vmatprep.mubr.f32.mxu0 0.0
  %106 = vmatmul.mubr.f32.gmra.mrb[0].mxu0 %v17
  %v107 = vpop.f32.mrb[0].mxu0
  %v108 = vadd.f32 %v39, %v107
  %v109 = vpop.f32.mrb[0].mxu0
  %110 = vdwg.mxu0
  %v111 = vld [vmem:[%s0] sm:$0xff]
  %v112 = vadd.f32 %v108, %v111
  %v113 = vmax.f32 %v112, 0.0
  %114 = vst [vmem:[%s4] sm:$0xff] %v113
  // Predicated region
  $region18: #{simple_rnn_cell.1} parent=0 // pred_check
    _
  $region19: #{simple_rnn_cell.1} parent=0 // pred_check_branch
    %116 = sbr.rel (0) target = $region21
  $region20: #{simple_rnn_cell.1} parent=0 // pred_region
    _
  $region21: #{simple_rnn_cell.1} parent=0 // pred_fallthru
    _
  // Predicated region
  $region22: #{simple_rnn_cell.1} parent=0 // pred_check
    _
  $region23: #{simple_rnn_cell.1} parent=0 // pred_check_branch
    %118 = sbr.rel (0) target = $region25
  $region24: #{simple_rnn_cell.1} parent=0 // pred_region
    _
  $region25: #{simple_rnn_cell.1} parent=0 // pred_fallthru
    _

</llo_original>
